<compile_context>
chip_gen: v5e
topology: v5e:2x2
jax: 0.10.0
libtpu: 0.0.40
codegen_flags: <defaults>
</compile_context>

<pallas_src>
import functools

import jax
import jax.numpy as jnp
from jax.experimental import pallas as pl
from jax.experimental.pallas import tpu as pltpu


def _round_up(x, m):
    return (x + m - 1) // m * m


def _round_down(x, m):
    return x // m * m


def _sublane_granularity(dtype):
    # packed-sublane granularity: f32 -> 8, bf16 -> 16, int8/fp8 -> 32
    return {4: 8, 2: 16, 1: 32}.get(jnp.dtype(dtype).itemsize, 8)


def _pick_tile_f(d_inner, max_tile_f):
    """d_inner slab width: full if small, else a 128-multiple that divides d_inner."""
    if d_inner <= max_tile_f:
        return d_inner
    start = max(128, (max_tile_f // 128) * 128)
    for cand in range(start, 127, -128):
        if d_inner % cand == 0:
            return cand
    return d_inner  # no clean divisor: fall back to full residency


def adaptive_ffn_kernel(x_ref, w1_ref, b1_ref, w2_ref, b2_ref,
                        gamma_ref, beta_ref, wgd_ref, bgd_ref,
                        out_ref, prob_ref, acc_ref,
                        *, ln_eps, identity_threshold, matmul_dtype):
    k = pl.program_id(1)

    @pl.when(k == 0)
    def _init():
        acc_ref[...] = jnp.zeros_like(acc_ref)

    x = x_ref[...]                                   # (TM, D), native dtype
    x_mm = x if matmul_dtype is None else x.astype(matmul_dtype)

    # ---- FFN matmuls for this d_inner slab (MXU, f32 accumulation) ----------
    h = jnp.dot(x_mm, w1_ref[...], preferred_element_type=jnp.float32)
    h = jnp.maximum(h + b1_ref[...], 0.0)            # (TM, tile_f) f32
    acc_ref[...] += jnp.dot(h.astype(w2_ref.dtype), w2_ref[...],
                            preferred_element_type=jnp.float32)

    # ---- epilogue on the last slab: bias, residual, LayerNorm, gate, select -
    @pl.when(k == pl.num_programs(1) - 1)
    def _epilogue():
        xf = x.astype(jnp.float32)
        y = acc_ref[...] + b2_ref[...] + xf          # ffn_residual

        mean = jnp.mean(y, axis=-1, keepdims=True)
        yc = y - mean                                # reused for var + norm
        var = jnp.mean(yc * yc, axis=-1, keepdims=True)
        y = yc * jax.lax.rsqrt(var + ln_eps)
        y = y * gamma_ref[...] + beta_ref[...]       # norm_in_ffn

        # GateNet (eval): softmax over 2 logits == sigmoid(l0 - l1), VPU + lane
        # reduction (no MXU interruption); scalar bias diff comes from SMEM.
        diff = jnp.sum(xf * wgd_ref[...], axis=-1, keepdims=True) + bgd_ref[0, 0]
        identity_prob = 1.0 / (1.0 + jnp.exp(-diff))          # (TM, 1) f32

        out_ref[...] = jnp.where(identity_prob > identity_threshold,
                                 xf, y).astype(out_ref.dtype)
        prob_ref[...] = identity_prob.astype(prob_ref.dtype)


def adaptive_ffn(x, params, *, ln_eps=1e-5, identity_threshold=0.9,
                 tile_m=256, tile_f=512, matmul_dtype=None):
    """x: (B, T, D). Returns (output (B,T,D), identity_prob (B,T,1)).

    tile_m: requested row tile (auto-clamped to a VMEM-aware, dtype-aware value).
    tile_f: requested d_inner slab width (use 128/256 on v5e, 256-512 on v6e/v7x;
            auto-clamped to a 128-multiple dividing d_inner, or full d_inner).
    matmul_dtype: e.g. jnp.bfloat16 to run only the two MXU matmuls in bf16.
    """
    B, T, D = x.shape
    N = B * T

    w1, b1 = params["w1"], params["b1"]          # (D, d_inner), (d_inner,)
    w2, b2 = params["w2"], params["b2"]          # (d_inner, D), (D,)
    gamma, beta = params["ln_gamma"], params["ln_beta"]   # (D,), (D,)
    wg, bg = params["gate_w"], params["gate_b"]  # (2, D), (2,)
    d_inner = w1.shape[1]

    if matmul_dtype is not None:
        w1 = w1.astype(matmul_dtype)
        w2 = w2.astype(matmul_dtype)

    f32 = jnp.float32
    b1_r = b1.reshape(1, d_inner).astype(f32)
    b2_r = b2.reshape(1, D).astype(f32)
    gamma_r = gamma.reshape(1, D).astype(f32)
    beta_r = beta.reshape(1, D).astype(f32)
    # 2-class softmax == sigmoid of the logit difference (exact).
    wg_diff = (wg[0] - wg[1]).reshape(1, D).astype(f32)
    bg_diff = jnp.reshape(bg[0] - bg[1], (1, 1)).astype(f32)

    # ---- generation-aware sizing --------------------------------------------
    try:
        vmem_cap = int(pltpu.get_tpu_info().vmem_capacity_bytes)
    except Exception:
        vmem_cap = 64 * 1024 * 1024          # v7x-safe fallback (64 MiB)

    sub = _sublane_granularity(x.dtype)
    tf = _pick_tile_f(d_inner, tile_f)
    nk = pl.cdiv(d_inner, tf)

    x_item = jnp.dtype(x.dtype).itemsize
    w_item = jnp.dtype(w1.dtype).itemsize

    # VMEM bytes that scale with the row tile (per row):
    per_row = (2 * D * x_item          # x block (double-buffered)
               + 2 * D * x_item        # out block
               + 2 * 128 * 4           # prob block (lane-padded (tile,1))
               + D * 4                 # f32 accumulator scratch
               + tf * 4                # h intermediate
               + 3 * D * 4)            # epilogue temporaries (xf, y, yc)
    # Row-tile-independent bytes (streamed weight slabs + small vectors):
    fixed = (2 * 2 * D * tf * w_item   # w1 + w2 slabs, double-buffered
             + 2 * (tf + 4 * D) * 4 + 8 * D * 4)

    budget = int(0.45 * vmem_cap)      # leave headroom for spills/compiler
    row_cap = max(sub, int((budget - fixed) // per_row))
    tile = min(_round_up(tile_m, sub),
               max(_round_down(row_cap, sub), sub),
               _round_up(N, sub))
    # Ensure >= 2 row steps so the "parallel" axis can shard across v7x's two
    # TensorCores (free on v5e/v6e: per-step overhead is only ~0.35 us).
    if N > sub:
        tile = min(tile, _round_up(pl.cdiv(N, 2), sub))
    tile = max(tile, sub)
    num_rows = pl.cdiv(N, tile)

    est_vmem = fixed + tile * per_row
    vmem_limit = int(min(0.9 * vmem_cap,
                         max(2 * est_vmem, 32 * 1024 * 1024)))

    xf = x.reshape(N, D)               # no padding: partial edge block is masked

    kernel = functools.partial(adaptive_ffn_kernel,
                               ln_eps=ln_eps,
                               identity_threshold=identity_threshold,
                               matmul_dtype=matmul_dtype)

    # Advisory cost estimate so XLA schedules surrounding ops sensibly.
    weight_fetches = num_rows if nk > 1 else 1
    cost = pl.CostEstimate(
        flops=int(4 * N * D * d_inner + 12 * N * D),
        transcendentals=int(2 * N),                  # sigmoid exp + LN rsqrt
        bytes_accessed=int(2 * N * D * x_item + N * 4
                           + weight_fetches * 2 * D * d_inner * w_item
                           + (d_inner + 4 * D + 1) * 4))

    out, prob = pl.pallas_call(
        kernel,
        out_shape=(jax.ShapeDtypeStruct((N, D), x.dtype),
                   jax.ShapeDtypeStruct((N, 1), jnp.float32)),
        grid=(num_rows, nk),
        in_specs=[
            pl.BlockSpec((tile, D), lambda i, k: (i, 0)),    # x rows (resident over k)
            pl.BlockSpec((D, tf), lambda i, k: (0, k)),      # w1 slab
            pl.BlockSpec((1, tf), lambda i, k: (0, k)),      # b1 slab
            pl.BlockSpec((tf, D), lambda i, k: (k, 0)),      # w2 slab
            pl.BlockSpec((1, D), lambda i, k: (0, 0)),       # b2
            pl.BlockSpec((1, D), lambda i, k: (0, 0)),       # ln gamma
            pl.BlockSpec((1, D), lambda i, k: (0, 0)),       # ln beta
            pl.BlockSpec((1, D), lambda i, k: (0, 0)),       # gate weight diff
            pl.BlockSpec(memory_space=pltpu.MemorySpace.SMEM),  # gate bias diff (scalar)
        ],
        out_specs=(pl.BlockSpec((tile, D), lambda i, k: (i, 0)),
                   pl.BlockSpec((tile, 1), lambda i, k: (i, 0))),
        scratch_shapes=[pltpu.VMEM((tile, D), jnp.float32)],  # f32 accumulator
        compiler_params=pltpu.CompilerParams(
            dimension_semantics=("parallel", "arbitrary"),
            vmem_limit_bytes=vmem_limit),
        cost_estimate=cost,
    )(xf, w1, b1_r, w2, b2_r, gamma_r, beta_r, wg_diff, bg_diff)

    return out.reshape(B, T, D), prob.reshape(B, T, 1)


def adaptive_ffn_reference(x, params, *, ln_eps=1e-5, identity_threshold=0.9):
    """Pure-JAX reference matching the PyTorch eval-mode forward."""
    w1, b1, w2, b2 = params["w1"], params["b1"], params["w2"], params["b2"]
    gamma, beta = params["ln_gamma"], params["ln_beta"]
    wg, bg = params["gate_w"], params["gate_b"]

    logits = x @ wg.T + bg
    prob = jax.nn.softmax(logits, axis=-1)
    identity_prob = prob[..., 0:1]

    h = jnp.maximum(x @ w1 + b1, 0.0)
    y = h @ w2 + b2
    y = y + x
    mean = y.mean(-1, keepdims=True)
    var = ((y - mean) ** 2).mean(-1, keepdims=True)
    y = (y - mean) / jnp.sqrt(var + ln_eps) * gamma + beta

    mask = (identity_prob > identity_threshold).astype(x.dtype)
    out = x * mask + y * (1.0 - mask)
    return out, identity_prob


def _make_params(key, D, D_INNER, init_identity_bias=2.0):
    k1, k2, kg = jax.random.split(key, 3)
    return {
        "w1": jax.random.normal(k1, (D, D_INNER), dtype=jnp.float32) * 0.1,
        "b1": jnp.zeros((D_INNER,), dtype=jnp.float32),
        "w2": jax.random.normal(k2, (D_INNER, D), dtype=jnp.float32) * 0.1,
        "b2": jnp.zeros((D,), dtype=jnp.float32),
        "ln_gamma": jnp.ones((D,), dtype=jnp.float32),
        "ln_beta": jnp.zeros((D,), dtype=jnp.float32),
        "gate_w": jax.random.normal(kg, (2, D), dtype=jnp.float32) * 0.5,
        "gate_b": jnp.array([init_identity_bias, 0.0], dtype=jnp.float32),
    }


if __name__ == "__main__":
    D, D_INNER = 32, 64
    key = jax.random.PRNGKey(0)
    kp, kx1, kx2 = jax.random.split(key, 3)
    params = _make_params(kp, D, D_INNER)

    # --- check 1: even row count (2 row tiles, single d_inner slab) ------------
    B, T = 2, 8
    x = jax.random.normal(kx1, (B, T, D), dtype=jnp.float32)
    out, prob = adaptive_ffn(x, params)
    out = jax.block_until_ready(out)
    prob = jax.block_until_ready(prob)
    ref_out, ref_prob = adaptive_ffn_reference(x, params)
    assert out.shape == (B, T, D) and prob.shape == (B, T, 1)
    assert jnp.allclose(out, ref_out, atol=1e-5, rtol=1e-5)
    assert jnp.allclose(prob, ref_prob, atol=1e-5, rtol=1e-5)

    # --- check 2: ragged row count (exercises the masked partial edge block) ---
    B2, T2 = 2, 13
    x2 = jax.random.normal(kx2, (B2, T2, D), dtype=jnp.float32)
    out2, prob2 = adaptive_ffn(x2, params)
    out2 = jax.block_until_ready(out2)
    prob2 = jax.block_until_ready(prob2)
    ref_out2, ref_prob2 = adaptive_ffn_reference(x2, params)
    assert out2.shape == (B2, T2, D) and prob2.shape == (B2, T2, 1)
    assert jnp.allclose(out2, ref_out2, atol=1e-5, rtol=1e-5)
    assert jnp.allclose(prob2, ref_prob2, atol=1e-5, rtol=1e-5)

    # --- check 3: bf16 matmuls (f32 gate/residual/LN epilogue), looser tol -----
    out3, prob3 = adaptive_ffn(x, params, matmul_dtype=jnp.bfloat16)
    out3 = jax.block_until_ready(out3)
    prob3 = jax.block_until_ready(prob3)
    assert jnp.allclose(out3, ref_out, atol=5e-2, rtol=0)
    assert jnp.allclose(prob3, ref_prob, atol=1e-4, rtol=0)

    print("KERNEL_OK")
</pallas_src>

<mosaic_0001>
module attributes {stable_mosaic.version = 11 : i64} {
  func.func @adaptive_ffn_kernel(%arg0: i32, %arg1: i32, %arg2: memref<8x32xf32, #tpu.memory_space<vmem>>, %arg3: memref<32x64xf32, #tpu.memory_space<vmem>>, %arg4: memref<1x64xf32, #tpu.memory_space<vmem>>, %arg5: memref<64x32xf32, #tpu.memory_space<vmem>>, %arg6: memref<1x32xf32, #tpu.memory_space<vmem>>, %arg7: memref<1x32xf32, #tpu.memory_space<vmem>>, %arg8: memref<1x32xf32, #tpu.memory_space<vmem>>, %arg9: memref<1x32xf32, #tpu.memory_space<vmem>>, %arg10: memref<1x1xf32, #tpu.memory_space<smem>>, %arg11: memref<8x32xf32, #tpu.memory_space<vmem>>, %arg12: memref<8x1xf32, #tpu.memory_space<vmem>>, %arg13: memref<8x32xf32, #tpu.memory_space<vmem>>) attributes {dimension_semantics = [#tpu.dimension_semantics<parallel>, #tpu.dimension_semantics<arbitrary>], iteration_bounds = array<i64: 2, 1>, scalar_prefetch = 0 : i64, scratch_operands = 1 : i64, tpu.core_type = #tpu.core_type<tc>, window_params = [{transform_indices = @transform_0, window_bounds = array<i64: 8, 32>}, {transform_indices = @transform_1, window_bounds = array<i64: 32, 64>}, {transform_indices = @transform_2, window_bounds = array<i64: 1, 64>}, {transform_indices = @transform_3, window_bounds = array<i64: 64, 32>}, {pipeline_mode = #tpu.pipeline_mode<synchronous>, transform_indices = @transform_4, window_bounds = array<i64: 1, 32>}, {pipeline_mode = #tpu.pipeline_mode<synchronous>, transform_indices = @transform_5, window_bounds = array<i64: 1, 32>}, {pipeline_mode = #tpu.pipeline_mode<synchronous>, transform_indices = @transform_6, window_bounds = array<i64: 1, 32>}, {pipeline_mode = #tpu.pipeline_mode<synchronous>, transform_indices = @transform_7, window_bounds = array<i64: 1, 32>}, {transform_indices = @transform_8, window_bounds = array<i64: 1, 1>}, {transform_indices = @transform_9, window_bounds = array<i64: 8, 32>}, {transform_indices = @transform_10, window_bounds = array<i64: 8, 1>}]} {
    %c0_i32 = arith.constant 0 : i32
    %0 = arith.cmpi eq, %arg1, %c0_i32 : i32
    %1 = arith.extui %0 : i1 to i32
    %c0_i32_0 = arith.constant 0 : i32
    %2 = arith.cmpi ne, %1, %c0_i32_0 : i32
    scf.if %2 {
      %cst_16 = arith.constant 0.000000e+00 : f32
      %19 = vector.broadcast %cst_16 : f32 to vector<8x32xf32>
      %c0_17 = arith.constant 0 : index
      %c0_18 = arith.constant 0 : index
      %20 = vector.load %arg13[%c0_17, %c0_18] : memref<8x32xf32, #tpu.memory_space<vmem>>, vector<8x32xf32>
      tpu.vector_store %arg13[%c0_17, %c0_18], %19 {strides = array<i32>} : memref<8x32xf32, #tpu.memory_space<vmem>>, vector<8x32xf32>,
    } else {
    }
    %c0 = arith.constant 0 : index
    %c0_1 = arith.constant 0 : index
    %3 = vector.load %arg2[%c0, %c0_1] : memref<8x32xf32, #tpu.memory_space<vmem>>, vector<8x32xf32>
    %c0_2 = arith.constant 0 : index
    %c0_3 = arith.constant 0 : index
    %4 = vector.load %arg3[%c0_2, %c0_3] : memref<32x64xf32, #tpu.memory_space<vmem>>, vector<32x64xf32>
    %cst = arith.constant dense<0.000000e+00> : vector<8x64xf32>
    %5 = tpu.matmul %3, %4, %cst {dimension_numbers = #tpu.dot_dimension_numbers<[1], [0], [0], [1], [0, 0, 1, 1], [], []>} : vector<8x32xf32>, vector<32x64xf32>, vector<8x64xf32> -> vector<8x64xf32>
    %c0_4 = arith.constant 0 : index
    %c0_5 = arith.constant 0 : index
    %6 = vector.load %arg4[%c0_4, %c0_5] : memref<1x64xf32, #tpu.memory_space<vmem>>, vector<1x64xf32>
    %7 = vector.broadcast %6 : vector<1x64xf32> to vector<8x64xf32>
    %8 = arith.addf %5, %7 : vector<8x64xf32>
    %cst_6 = arith.constant 0.000000e+00 : f32
    %9 = vector.broadcast %cst_6 : f32 to vector<8x64xf32>
    %10 = arith.maximumf %8, %9 : vector<8x64xf32>
    %c0_7 = arith.constant 0 : index
    %c0_8 = arith.constant 0 : index
    %11 = vector.load %arg13[%c0_7, %c0_8] : memref<8x32xf32, #tpu.memory_space<vmem>>, vector<8x32xf32>
    %c0_9 = arith.constant 0 : index
    %c0_10 = arith.constant 0 : index
    %12 = vector.load %arg5[%c0_9, %c0_10] : memref<64x32xf32, #tpu.memory_space<vmem>>, vector<64x32xf32>
    %cst_11 = arith.constant dense<0.000000e+00> : vector<8x32xf32>
    %13 = tpu.matmul %10, %12, %cst_11 {dimension_numbers = #tpu.dot_dimension_numbers<[1], [0], [0], [1], [0, 0, 1, 1], [], []>} : vector<8x64xf32>, vector<64x32xf32>, vector<8x32xf32> -> vector<8x32xf32>
    %14 = arith.addf %11, %13 : vector<8x32xf32>
    %c0_12 = arith.constant 0 : index
    %c0_13 = arith.constant 0 : index
    %15 = vector.load %arg13[%c0_12, %c0_13] : memref<8x32xf32, #tpu.memory_space<vmem>>, vector<8x32xf32>
    tpu.vector_store %arg13[%c0_12, %c0_13], %14 {strides = array<i32>} : memref<8x32xf32, #tpu.memory_space<vmem>>, vector<8x32xf32>,
    %c0_i32_14 = arith.constant 0 : i32
    %16 = arith.cmpi eq, %arg1, %c0_i32_14 : i32
    %17 = arith.extui %16 : i1 to i32
    %c0_i32_15 = arith.constant 0 : i32
    %18 = arith.cmpi ne, %17, %c0_i32_15 : i32
    scf.if %18 {
      %c0_16 = arith.constant 0 : index
      %c0_17 = arith.constant 0 : index
      %19 = vector.load %arg13[%c0_16, %c0_17] : memref<8x32xf32, #tpu.memory_space<vmem>>, vector<8x32xf32>
      %c0_18 = arith.constant 0 : index
      %c0_19 = arith.constant 0 : index
      %20 = vector.load %arg6[%c0_18, %c0_19] : memref<1x32xf32, #tpu.memory_space<vmem>>, vector<1x32xf32>
      %21 = vector.broadcast %20 : vector<1x32xf32> to vector<8x32xf32>
      %22 = arith.addf %19, %21 : vector<8x32xf32>
      %23 = arith.addf %22, %3 : vector<8x32xf32>
      %cst_20 = arith.constant dense<0.000000e+00> : vector<8xf32>
      %24 = vector.multi_reduction <add>, %23, %cst_20 [1] : vector<8x32xf32> to vector<8xf32>
      %25 = vector.shape_cast %24 : vector<8xf32> to vector<8x1xf32>
      %cst_21 = arith.constant 3.200000e+01 : f32
      %26 = vector.broadcast %cst_21 : f32 to vector<8x1xf32>
      %27 = arith.divf %25, %26 : vector<8x1xf32>
      %28 = vector.broadcast %27 : vector<8x1xf32> to vector<8x32xf32>
      %29 = arith.subf %23, %28 : vector<8x32xf32>
      %30 = arith.mulf %29, %29 : vector<8x32xf32>
      %cst_22 = arith.constant dense<0.000000e+00> : vector<8xf32>
      %31 = vector.multi_reduction <add>, %30, %cst_22 [1] : vector<8x32xf32> to vector<8xf32>
      %32 = vector.shape_cast %31 : vector<8xf32> to vector<8x1xf32>
      %cst_23 = arith.constant 3.200000e+01 : f32
      %33 = vector.broadcast %cst_23 : f32 to vector<8x1xf32>
      %34 = arith.divf %32, %33 : vector<8x1xf32>
      %cst_24 = arith.constant 9.99999974E-6 : f32
      %35 = vector.broadcast %cst_24 : f32 to vector<8x1xf32>
      %36 = arith.addf %34, %35 : vector<8x1xf32>
      %37 = math.rsqrt %36 : vector<8x1xf32>
      %38 = vector.broadcast %37 : vector<8x1xf32> to vector<8x32xf32>
      %39 = arith.mulf %29, %38 : vector<8x32xf32>
      %c0_25 = arith.constant 0 : index
      %c0_26 = arith.constant 0 : index
      %40 = vector.load %arg7[%c0_25, %c0_26] : memref<1x32xf32, #tpu.memory_space<vmem>>, vector<1x32xf32>
      %41 = vector.broadcast %40 : vector<1x32xf32> to vector<8x32xf32>
      %42 = arith.mulf %39, %41 : vector<8x32xf32>
      %c0_27 = arith.constant 0 : index
      %c0_28 = arith.constant 0 : index
      %43 = vector.load %arg8[%c0_27, %c0_28] : memref<1x32xf32, #tpu.memory_space<vmem>>, vector<1x32xf32>
      %44 = vector.broadcast %43 : vector<1x32xf32> to vector<8x32xf32>
      %45 = arith.addf %42, %44 : vector<8x32xf32>
      %c0_29 = arith.constant 0 : index
      %c0_30 = arith.constant 0 : index
      %46 = vector.load %arg9[%c0_29, %c0_30] : memref<1x32xf32, #tpu.memory_space<vmem>>, vector<1x32xf32>
      %47 = vector.broadcast %46 : vector<1x32xf32> to vector<8x32xf32>
      %48 = arith.mulf %3, %47 : vector<8x32xf32>
      %cst_31 = arith.constant dense<0.000000e+00> : vector<8xf32>
      %49 = vector.multi_reduction <add>, %48, %cst_31 [1] : vector<8x32xf32> to vector<8xf32>
      %50 = vector.shape_cast %49 : vector<8xf32> to vector<8x1xf32>
      %c0_32 = arith.constant 0 : index
      %c0_33 = arith.constant 0 : index
      %51 = memref.load %arg10[%c0_32, %c0_33] : memref<1x1xf32, #tpu.memory_space<smem>>
      %52 = vector.broadcast %51 : f32 to vector<8x1xf32>
      %53 = arith.addf %50, %52 : vector<8x1xf32>
      %cst_34 = arith.constant 0.000000e+00 : f32
      %54 = vector.broadcast %cst_34 : f32 to vector<8x1xf32>
      %55 = arith.subf %54, %53 : vector<8x1xf32>
      %56 = math.exp %55 : vector<8x1xf32>
      %cst_35 = arith.constant 1.000000e+00 : f32
      %57 = vector.broadcast %cst_35 : f32 to vector<8x1xf32>
      %58 = arith.addf %57, %56 : vector<8x1xf32>
      %cst_36 = arith.constant 1.000000e+00 : f32
      %59 = vector.broadcast %cst_36 : f32 to vector<8x1xf32>
      %60 = arith.divf %59, %58 : vector<8x1xf32>
      %cst_37 = arith.constant 0.899999976 : f32
      %61 = vector.broadcast %cst_37 : f32 to vector<8x1xf32>
      %62 = arith.cmpf ogt, %60, %61 : vector<8x1xf32>
      %63 = vector.shape_cast %62 : vector<8x1xi1> to vector<8x1xi1>
      %64 = vector.broadcast %63 : vector<8x1xi1> to vector<8x32xi1>
      %65 = arith.select %64, %3, %45 : vector<8x32xi1>, vector<8x32xf32>
      %c0_38 = arith.constant 0 : index
      %c0_39 = arith.constant 0 : index
      %66 = vector.load %arg11[%c0_38, %c0_39] : memref<8x32xf32, #tpu.memory_space<vmem>>, vector<8x32xf32>
      tpu.vector_store %arg11[%c0_38, %c0_39], %65 {strides = array<i32>} : memref<8x32xf32, #tpu.memory_space<vmem>>, vector<8x32xf32>,
      %c0_40 = arith.constant 0 : index
      %c0_41 = arith.constant 0 : index
      %67 = vector.load %arg12[%c0_40, %c0_41] : memref<8x1xf32, #tpu.memory_space<vmem>>, vector<8x1xf32>
      tpu.vector_store %arg12[%c0_40, %c0_41], %60 {strides = array<i32>} : memref<8x1xf32, #tpu.memory_space<vmem>>, vector<8x1xf32>,
    } else {
    }
    return
  }
  func.func @transform_0(%arg0: i32, %arg1: i32) -> (i32, i32) {
    %c0_i32 = arith.constant 0 : i32
    %c0_i32_0 = arith.constant 0 : i32
    return %arg0, %c0_i32 : i32, i32
  }
  func.func @transform_1(%arg0: i32, %arg1: i32) -> (i32, i32) {
    %c0_i32 = arith.constant 0 : i32
    %c0_i32_0 = arith.constant 0 : i32
    return %c0_i32, %arg1 : i32, i32
  }
  func.func @transform_2(%arg0: i32, %arg1: i32) -> (i32, i32) {
    %c0_i32 = arith.constant 0 : i32
    %c0_i32_0 = arith.constant 0 : i32
    return %c0_i32, %arg1 : i32, i32
  }
  func.func @transform_3(%arg0: i32, %arg1: i32) -> (i32, i32) {
    %c0_i32 = arith.constant 0 : i32
    %c0_i32_0 = arith.constant 0 : i32
    return %arg1, %c0_i32 : i32, i32
  }
  func.func @transform_4(%arg0: i32, %arg1: i32) -> (i32, i32) {
    %c0_i32 = arith.constant 0 : i32
    %c0_i32_0 = arith.constant 0 : i32
    %c0_i32_1 = arith.constant 0 : i32
    return %c0_i32, %c0_i32_0 : i32, i32
  }
  func.func @transform_5(%arg0: i32, %arg1: i32) -> (i32, i32) {
    %c0_i32 = arith.constant 0 : i32
    %c0_i32_0 = arith.constant 0 : i32
    %c0_i32_1 = arith.constant 0 : i32
    return %c0_i32, %c0_i32_0 : i32, i32
  }
  func.func @transform_6(%arg0: i32, %arg1: i32) -> (i32, i32) {
    %c0_i32 = arith.constant 0 : i32
    %c0_i32_0 = arith.constant 0 : i32
    %c0_i32_1 = arith.constant 0 : i32
    return %c0_i32, %c0_i32_0 : i32, i32
  }
  func.func @transform_7(%arg0: i32, %arg1: i32) -> (i32, i32) {
    %c0_i32 = arith.constant 0 : i32
    %c0_i32_0 = arith.constant 0 : i32
    %c0_i32_1 = arith.constant 0 : i32
    return %c0_i32, %c0_i32_0 : i32, i32
  }
  func.func @transform_8(%arg0: i32, %arg1: i32) -> (i32, i32) {
    %c0_i32 = arith.constant 0 : i32
    %c0_i32_0 = arith.constant 0 : i32
    %c0_i32_1 = arith.constant 0 : i32
    return %c0_i32, %c0_i32_0 : i32, i32
  }
  func.func @transform_9(%arg0: i32, %arg1: i32) -> (i32, i32) {
    %c0_i32 = arith.constant 0 : i32
    %c0_i32_0 = arith.constant 0 : i32
    return %arg0, %c0_i32 : i32, i32
  }
  func.func @transform_10(%arg0: i32, %arg1: i32) -> (i32, i32) {
    %c0_i32 = arith.constant 0 : i32
    %c0_i32_0 = arith.constant 0 : i32
    return %arg0, %c0_i32 : i32, i32
  }
}

</mosaic_0001>

<llo_original>
// kernel: tpu_custom_call.1
$region0: #{tpu_custom_call.1}
  #allocation0 [shape = 'u32[]', space=smem, size = 0x4, offset = 0x4, fixed_abs, tag = 'smem constant byte address 0x4 - core index']
  #allocation1 [shape = 'u32[72,128]{1,0:T(1,128)}', space=vmem, size = 0x9000, scoped, tag = 'internal scratch']
  #allocation2 [shape = 'f32[8,32]{1,0:T(8,128)}', space=vmem, size = 0x1000, scoped, tag = 'scratch operand']
  #allocation3 [shape = 'f32[1,1]{1,0:T(1,128)S(6)}', space=smem, size = 0x200, scoped, tag = 'scoped memory for tpu_custom_call.1']
  %s0 = inlined_call_operand.vmem [shape: f32[16,32], index: 0, kind: input, shape index: {}]
  %s1 = inlined_call_operand.vmem [shape: f32[32,64], index: 1, kind: input, shape index: {}]
  %s2 = inlined_call_operand.vmem [shape: f32[1,64], index: 2, kind: input, shape index: {}]
  %s3 = inlined_call_operand.vmem [shape: f32[64,32], index: 3, kind: input, shape index: {}]
  %s4 = inlined_call_operand.vmem [shape: f32[1,32], index: 4, kind: input, shape index: {}]
  %s5 = inlined_call_operand.vmem [shape: f32[1,32], index: 5, kind: input, shape index: {}]
  %s6 = inlined_call_operand.vmem [shape: f32[1,32], index: 6, kind: input, shape index: {}]
  %s7 = inlined_call_operand.vmem [shape: f32[1,32], index: 7, kind: input, shape index: {}]
  %s8 = inlined_call_operand.<no memory space> [shape: f32[1,1], index: 8, kind: input, shape index: {}]
  %s9 = inlined_call_operand.hbm [shape: f32[16,32], index: 9, kind: output, shape index: {0}]
  %s10 = inlined_call_operand.vmem [shape: f32[16,1], index: 10, kind: output, shape index: {1}]
  %11 = xla_tuple %s9, %s10
  %s12 = sld [smem:[#allocation0]]
  $region85: #{tpu_custom_call.1} parent=0
    _
  %s14 = ssub.s32 1, %s12
  %s15 = scalar_select 0, %s14, %s12
  %16 = sst [smem:[#allocation3]] %s8
  $region1: #{tpu_custom_call.1} parent=0
    #allocation4 [shape = 'u8[8192]{0}', space=vmem, size = 0x2000, scoped, tag = 'output window, operand 0']
    #allocation5 [shape = 's32[2]{0}', space=sflag, size = 0x8, scoped, tag = 'scoped memory for tpu_custom_call.1']
    %17 = vsyncpa [#allocation5], 0
    %s18 = scalar_lea.sflag [#allocation5], 1
    %19 = vsyncpa %s18, 0
    loop: start=0, step=1, limit=4
    $region2: #{tpu_custom_call.1} parent=1 // loop_pre_header
      _
    $region3: #{tpu_custom_call.1} parent=1 // loop_header
      %s21 = sphi 0, %s25
      %p22 = scmp.ge.s32.totalorder %s21, 4
      %s28 = sphi 0, %s40
      %s29 = sphi 0, %s36
      %s30 = sphi 0, %s28
      %s31 = sphi 0, %s29
      %s32 = sphi 0, %s30
      %s33 = sphi 0, %s31
      %s43 = sphi 0, %s45
      %s46 = sphi 0, %s43
      %s47 = sphi 0, %s46
      %s63 = sphi 0, %s47
      %s69 = sphi 0, %s71
      %s72 = sphi 0, %s69
      %s73 = sphi 0, %s72
      %s89 = sphi 0, %s73
      %s95 = sphi 0, %s97
      %s98 = sphi 0, %s95
      %s99 = sphi 0, %s98
      %s115 = sphi 0, %s99
      %s121 = sphi 0, %s123
      %s124 = sphi 0, %s121
      %s125 = sphi 0, %s124
      %s141 = sphi 0, %s125
      %s145 = sphi 0, %s145
      %s147 = sphi 0, %s145
      %s148 = sphi 0, %s147
      %s162 = sphi 0, %s148
      %s166 = sphi 0, %s166
      %s168 = sphi 0, %s166
      %s169 = sphi 0, %s168
      %s183 = sphi 0, %s169
      %s187 = sphi 0, %s187
      %s189 = sphi 0, %s187
      %s190 = sphi 0, %s189
      %s204 = sphi 0, %s190
      %s208 = sphi 0, %s208
      %s210 = sphi 0, %s208
      %s211 = sphi 0, %s210
      %s225 = sphi 0, %s211
      %s229 = sphi 0, %s229
      %s231 = sphi 0, %s229
      %s232 = sphi 0, %s231
      %s246 = sphi 0, %s232
      %s252 = sphi 0, %s254
      %s255 = sphi 0, %s252
      %s256 = sphi 0, %s255
      %s272 = sphi 0, %s256
      %s278 = sphi 0, %s280
      %s281 = sphi 0, %s278
      %s282 = sphi 0, %s281
      %s298 = sphi 0, %s282
    $region4: #{tpu_custom_call.1} parent=1 // loop_header_branch
      %24 = sbr.rel (%p22) target = $region8
    $region5: #{tpu_custom_call.1} parent=1 // loop_body
      %s26 = ssub.s32 %s21, 1
      %s27 = ssub.s32 %s21, 2
      %s34 = sadd.s32 1, %s29
      %p35 = scmp.ge.s32.totalorder %s34, 1
      %s36 = scalar_select %p35, 0, %s34
      %s37 = sadd.s32 1, %s28
      %s38 = scalar_select %p35, %s37, %s28
      %p39 = scmp.ge.s32.totalorder %s38, 2
      %s40 = scalar_select %p39, 0, %s38
      %s41 = ssub.s32 %s28, %s40
      %p42 = scmp.eq.s32.totalorder %s41, 0
      %s44 = sadd.s32 %s43, 1
      %s45 = scalar_select %p42, %s43, %s44
      %p48 = pneg %p42
      %p49 = scmp.eq.s32.totalorder %s21, 1
      %p50 = por %p48, %p49
      %p51 = scmp.ne.s32.totalorder %s43, %s46
      %p52 = scmp.eq.s32.totalorder %s21, 0
      %p53 = por %p51, %p52
      %p54 = scmp.ne.s32.totalorder %s43, %s46
      %p55 = scmp.eq.s32.totalorder %s26, 1
      %p56 = por %p54, %p55
      %p57 = scmp.ne.s32.totalorder %s46, %s47
      %p58 = scmp.eq.s32.totalorder %s26, 0
      %p59 = por %p57, %p58
      %p60 = scmp.ne.s32.totalorder %s46, %s47
      %p61 = scmp.eq.s32.totalorder %s27, 1
      %p62 = por %p60, %p61
      %p64 = scmp.ne.s32.totalorder %s47, %s63
      %p65 = scmp.eq.s32.totalorder %s27, 0
      %p66 = por %p64, %p65
      %s67 = ssub.s32 %s29, %s36
      %p68 = scmp.eq.s32.totalorder %s67, 0
      %s70 = sadd.s32 %s69, 1
      %s71 = scalar_select %p68, %s69, %s70
      %p74 = pneg %p68
      %p75 = scmp.eq.s32.totalorder %s21, 1
      %p76 = por %p74, %p75
      %p77 = scmp.ne.s32.totalorder %s69, %s72
      %p78 = scmp.eq.s32.totalorder %s21, 0
      %p79 = por %p77, %p78
      %p80 = scmp.ne.s32.totalorder %s69, %s72
      %p81 = scmp.eq.s32.totalorder %s26, 1
      %p82 = por %p80, %p81
      %p83 = scmp.ne.s32.totalorder %s72, %s73
      %p84 = scmp.eq.s32.totalorder %s26, 0
      %p85 = por %p83, %p84
      %p86 = scmp.ne.s32.totalorder %s72, %s73
      %p87 = scmp.eq.s32.totalorder %s27, 1
      %p88 = por %p86, %p87
      %p90 = scmp.ne.s32.totalorder %s73, %s89
      %p91 = scmp.eq.s32.totalorder %s27, 0
      %p92 = por %p90, %p91
      %s93 = ssub.s32 %s29, %s36
      %p94 = scmp.eq.s32.totalorder %s93, 0
      %s96 = sadd.s32 %s95, 1
      %s97 = scalar_select %p94, %s95, %s96
      %p100 = pneg %p94
      %p101 = scmp.eq.s32.totalorder %s21, 1
      %p102 = por %p100, %p101
      %p103 = scmp.ne.s32.totalorder %s95, %s98
      %p104 = scmp.eq.s32.totalorder %s21, 0
      %p105 = por %p103, %p104
      %p106 = scmp.ne.s32.totalorder %s95, %s98
      %p107 = scmp.eq.s32.totalorder %s26, 1
      %p108 = por %p106, %p107
      %p109 = scmp.ne.s32.totalorder %s98, %s99
      %p110 = scmp.eq.s32.totalorder %s26, 0
      %p111 = por %p109, %p110
      %p112 = scmp.ne.s32.totalorder %s98, %s99
      %p113 = scmp.eq.s32.totalorder %s27, 1
      %p114 = por %p112, %p113
      %p116 = scmp.ne.s32.totalorder %s99, %s115
      %p117 = scmp.eq.s32.totalorder %s27, 0
      %p118 = por %p116, %p117
      %s119 = ssub.s32 %s29, %s36
      %p120 = scmp.eq.s32.totalorder %s119, 0
      %s122 = sadd.s32 %s121, 1
      %s123 = scalar_select %p120, %s121, %s122
      %p126 = pneg %p120
      %p127 = scmp.eq.s32.totalorder %s21, 1
      %p128 = por %p126, %p127
      %p129 = scmp.ne.s32.totalorder %s121, %s124
      %p130 = scmp.eq.s32.totalorder %s21, 0
      %p131 = por %p129, %p130
      %p132 = scmp.ne.s32.totalorder %s121, %s124
      %p133 = scmp.eq.s32.totalorder %s26, 1
      %p134 = por %p132, %p133
      %p135 = scmp.ne.s32.totalorder %s124, %s125
      %p136 = scmp.eq.s32.totalorder %s26, 0
      %p137 = por %p135, %p136
      %p138 = scmp.ne.s32.totalorder %s124, %s125
      %p139 = scmp.eq.s32.totalorder %s27, 1
      %p140 = por %p138, %p139
      %p142 = scmp.ne.s32.totalorder %s125, %s141
      %p143 = scmp.eq.s32.totalorder %s27, 0
      %p144 = por %p142, %p143
      %s146 = sadd.s32 %s145, 1
      %p149 = scmp.eq.s32.totalorder %s21, 1
      %p150 = scmp.ne.s32.totalorder %s145, %s147
      %p151 = scmp.eq.s32.totalorder %s21, 0
      %p152 = por %p150, %p151
      %p153 = scmp.ne.s32.totalorder %s145, %s147
      %p154 = scmp.eq.s32.totalorder %s26, 1
      %p155 = por %p153, %p154
      %p156 = scmp.ne.s32.totalorder %s147, %s148
      %p157 = scmp.eq.s32.totalorder %s26, 0
      %p158 = por %p156, %p157
      %p159 = scmp.ne.s32.totalorder %s147, %s148
      %p160 = scmp.eq.s32.totalorder %s27, 1
      %p161 = por %p159, %p160
      %p163 = scmp.ne.s32.totalorder %s148, %s162
      %p164 = scmp.eq.s32.totalorder %s27, 0
      %p165 = por %p163, %p164
      %s167 = sadd.s32 %s166, 1
      %p170 = scmp.eq.s32.totalorder %s21, 1
      %p171 = scmp.ne.s32.totalorder %s166, %s168
      %p172 = scmp.eq.s32.totalorder %s21, 0
      %p173 = por %p171, %p172
      %p174 = scmp.ne.s32.totalorder %s166, %s168
      %p175 = scmp.eq.s32.totalorder %s26, 1
      %p176 = por %p174, %p175
      %p177 = scmp.ne.s32.totalorder %s168, %s169
      %p178 = scmp.eq.s32.totalorder %s26, 0
      %p179 = por %p177, %p178
      %p180 = scmp.ne.s32.totalorder %s168, %s169
      %p181 = scmp.eq.s32.totalorder %s27, 1
      %p182 = por %p180, %p181
      %p184 = scmp.ne.s32.totalorder %s169, %s183
      %p185 = scmp.eq.s32.totalorder %s27, 0
      %p186 = por %p184, %p185
      %s188 = sadd.s32 %s187, 1
      %p191 = scmp.eq.s32.totalorder %s21, 1
      %p192 = scmp.ne.s32.totalorder %s187, %s189
      %p193 = scmp.eq.s32.totalorder %s21, 0
      %p194 = por %p192, %p193
      %p195 = scmp.ne.s32.totalorder %s187, %s189
      %p196 = scmp.eq.s32.totalorder %s26, 1
      %p197 = por %p195, %p196
      %p198 = scmp.ne.s32.totalorder %s189, %s190
      %p199 = scmp.eq.s32.totalorder %s26, 0
      %p200 = por %p198, %p199
      %p201 = scmp.ne.s32.totalorder %s189, %s190
      %p202 = scmp.eq.s32.totalorder %s27, 1
      %p203 = por %p201, %p202
      %p205 = scmp.ne.s32.totalorder %s190, %s204
      %p206 = scmp.eq.s32.totalorder %s27, 0
      %p207 = por %p205, %p206
      %s209 = sadd.s32 %s208, 1
      %p212 = scmp.eq.s32.totalorder %s21, 1
      %p213 = scmp.ne.s32.totalorder %s208, %s210
      %p214 = scmp.eq.s32.totalorder %s21, 0
      %p215 = por %p213, %p214
      %p216 = scmp.ne.s32.totalorder %s208, %s210
      %p217 = scmp.eq.s32.totalorder %s26, 1
      %p218 = por %p216, %p217
      %p219 = scmp.ne.s32.totalorder %s210, %s211
      %p220 = scmp.eq.s32.totalorder %s26, 0
      %p221 = por %p219, %p220
      %p222 = scmp.ne.s32.totalorder %s210, %s211
      %p223 = scmp.eq.s32.totalorder %s27, 1
      %p224 = por %p222, %p223
      %p226 = scmp.ne.s32.totalorder %s211, %s225
      %p227 = scmp.eq.s32.totalorder %s27, 0
      %p228 = por %p226, %p227
      %s230 = sadd.s32 %s229, 1
      %p233 = scmp.eq.s32.totalorder %s21, 1
      %p234 = scmp.ne.s32.totalorder %s229, %s231
      %p235 = scmp.eq.s32.totalorder %s21, 0
      %p236 = por %p234, %p235
      %p237 = scmp.ne.s32.totalorder %s229, %s231
      %p238 = scmp.eq.s32.totalorder %s26, 1
      %p239 = por %p237, %p238
      %p240 = scmp.ne.s32.totalorder %s231, %s232
      %p241 = scmp.eq.s32.totalorder %s26, 0
      %p242 = por %p240, %p241
      %p243 = scmp.ne.s32.totalorder %s231, %s232
      %p244 = scmp.eq.s32.totalorder %s27, 1
      %p245 = por %p243, %p244
      %p247 = scmp.ne.s32.totalorder %s232, %s246
      %p248 = scmp.eq.s32.totalorder %s27, 0
      %p249 = por %p247, %p248
      %s250 = ssub.s32 %s28, %s40
      %p251 = scmp.eq.s32.totalorder %s250, 0
      %s253 = sadd.s32 %s252, 1
      %s254 = scalar_select %p251, %s252, %s253
      %p257 = pneg %p251
      %p258 = scmp.eq.s32.totalorder %s21, 1
      %p259 = por %p257, %p258
      %p260 = scmp.ne.s32.totalorder %s252, %s255
      %p261 = scmp.eq.s32.totalorder %s21, 0
      %p262 = por %p260, %p261
      %p263 = scmp.ne.s32.totalorder %s252, %s255
      %p264 = scmp.eq.s32.totalorder %s26, 1
      %p265 = por %p263, %p264
      %p266 = scmp.ne.s32.totalorder %s255, %s256
      %p267 = scmp.eq.s32.totalorder %s26, 0
      %p268 = por %p266, %p267
      %p269 = scmp.ne.s32.totalorder %s255, %s256
      %p270 = scmp.eq.s32.totalorder %s27, 1
      %p271 = por %p269, %p270
      %p273 = scmp.ne.s32.totalorder %s256, %s272
      %p274 = scmp.eq.s32.totalorder %s27, 0
      %p275 = por %p273, %p274
      %s276 = ssub.s32 %s28, %s40
      %p277 = scmp.eq.s32.totalorder %s276, 0
      %s279 = sadd.s32 %s278, 1
      %s280 = scalar_select %p277, %s278, %s279
      %p283 = pneg %p277
      %p284 = scmp.eq.s32.totalorder %s21, 1
      %p285 = por %p283, %p284
      %p286 = scmp.ne.s32.totalorder %s278, %s281
      %p287 = scmp.eq.s32.totalorder %s21, 0
      %p288 = por %p286, %p287
      %p289 = scmp.ne.s32.totalorder %s278, %s281
      %p290 = scmp.eq.s32.totalorder %s26, 1
      %p291 = por %p289, %p290
      %p292 = scmp.ne.s32.totalorder %s281, %s282
      %p293 = scmp.eq.s32.totalorder %s26, 0
      %p294 = por %p292, %p293
      %p295 = scmp.ne.s32.totalorder %s281, %s282
      %p296 = scmp.eq.s32.totalorder %s27, 1
      %p297 = por %p295, %p296
      %p299 = scmp.ne.s32.totalorder %s282, %s298
      %p300 = scmp.eq.s32.totalorder %s27, 0
      %p301 = por %p299, %p300
      %p302 = scmp.le.s32.totalorder 1, %s21
      %p303 = scmp.lt.s32.totalorder %s21, 3
      %p304 = pnand %p302, %p303
      %p305 = pneg %p304
      // Predicated region
      $region9: #{tpu_custom_call.1} parent=5 // pred_check
        _
      $region10: #{tpu_custom_call.1} parent=5 // pred_check_branch
        %307 = sbr.rel (%p304) target = $region12
      $region11: #{tpu_custom_call.1} parent=5 // pred_region
        %s308 = ssub.s32 %s21, 1
        // Predicated region
        $region13: #{tpu_custom_call.1} parent=11 // pred_check
          %p309 = pneg %p85
        $region14: #{tpu_custom_call.1} parent=11 // pred_check_branch
          %311 = sbr.rel (%p309) target = $region16
        $region15: #{tpu_custom_call.1} parent=11 // pred_region
          %p312 = scmp.lt.s32.totalorder %s31, 0
          %s313 = scalar_select %p312, %s31, 0
          %s314 = smul.addr %s313, 8
          %s315 = scalar_lea.vmem %s1, %s314
        $region16: #{tpu_custom_call.1} parent=11 // pred_fallthru
          _
        // Predicated region
        $region17: #{tpu_custom_call.1} parent=11 // pred_check
          %p316 = pneg %p111
        $region18: #{tpu_custom_call.1} parent=11 // pred_check_branch
          %318 = sbr.rel (%p316) target = $region20
        $region19: #{tpu_custom_call.1} parent=11 // pred_region
          %p319 = scmp.lt.s32.totalorder %s31, 0
          %s320 = scalar_select %p319, %s31, 0
          %s321 = scalar_lea.vmem %s2, %s320
        $region20: #{tpu_custom_call.1} parent=11 // pred_fallthru
          _
        // Predicated region
        $region21: #{tpu_custom_call.1} parent=11 // pred_check
          %p322 = pneg %p137
        $region22: #{tpu_custom_call.1} parent=11 // pred_check_branch
          %324 = sbr.rel (%p322) target = $region24
        $region23: #{tpu_custom_call.1} parent=11 // pred_region
          %s325 = smul.u32 8, %s31
          %p326 = scmp.lt.s32.totalorder %s325, 7
          %s327 = scalar_select %p326, %s325, 7
          %s328 = smul.addr %s327, 8
          %s329 = scalar_lea.vmem %s3, %s328
          %s330 = smul.u32 8, %s31
        $region24: #{tpu_custom_call.1} parent=11 // pred_fallthru
          _
        // Predicated region
        $region25: #{tpu_custom_call.1} parent=11 // pred_check
          %p331 = pneg %p158
        $region26: #{tpu_custom_call.1} parent=11 // pred_check_branch
          %333 = sbr.rel (%p331) target = $region28
        $region27: #{tpu_custom_call.1} parent=11 // pred_region
          _
        $region28: #{tpu_custom_call.1} parent=11 // pred_fallthru
          _
        // Predicated region
        $region29: #{tpu_custom_call.1} parent=11 // pred_check
          %p334 = pneg %p179
        $region30: #{tpu_custom_call.1} parent=11 // pred_check_branch
          %336 = sbr.rel (%p334) target = $region32
        $region31: #{tpu_custom_call.1} parent=11 // pred_region
          _
        $region32: #{tpu_custom_call.1} parent=11 // pred_fallthru
          _
        // Predicated region
        $region33: #{tpu_custom_call.1} parent=11 // pred_check
          %p337 = pneg %p200
        $region34: #{tpu_custom_call.1} parent=11 // pred_check_branch
          %339 = sbr.rel (%p337) target = $region36
        $region35: #{tpu_custom_call.1} parent=11 // pred_region
          _
        $region36: #{tpu_custom_call.1} parent=11 // pred_fallthru
          _
        // Predicated region
        $region37: #{tpu_custom_call.1} parent=11 // pred_check
          %p340 = pneg %p221
        $region38: #{tpu_custom_call.1} parent=11 // pred_check_branch
          %342 = sbr.rel (%p340) target = $region40
        $region39: #{tpu_custom_call.1} parent=11 // pred_region
          _
        $region40: #{tpu_custom_call.1} parent=11 // pred_fallthru
          _
        // Predicated region
        $region41: #{tpu_custom_call.1} parent=11 // pred_check
          %p343 = pneg %p242
        $region42: #{tpu_custom_call.1} parent=11 // pred_check_branch
          %345 = sbr.rel (%p343) target = $region44
        $region43: #{tpu_custom_call.1} parent=11 // pred_region
          _
        $region44: #{tpu_custom_call.1} parent=11 // pred_fallthru
          _
      $region12: #{tpu_custom_call.1} parent=5 // pred_fallthru
        _
      %p346 = scmp.lt.s32.totalorder %s21, 2
      // Predicated region
      $region45: #{tpu_custom_call.1} parent=5 // pred_check
        %p347 = pneg %p346
      $region46: #{tpu_custom_call.1} parent=5 // pred_check_branch
        %349 = sbr.rel (%p347) target = $region48
      $region47: #{tpu_custom_call.1} parent=5 // pred_region
        // Predicated region
        $region49: #{tpu_custom_call.1} parent=47 // pred_check
          %p350 = pneg %p53
        $region50: #{tpu_custom_call.1} parent=47 // pred_check_branch
          %352 = sbr.rel (%p350) target = $region52
        $region51: #{tpu_custom_call.1} parent=47 // pred_region
          %p353 = scmp.lt.s32.totalorder %s28, 1
          %s354 = scalar_select %p353, %s28, 1
          %s355 = smul.addr %s354, 8
          %s356 = scalar_lea.vmem %s0, %s355
        $region52: #{tpu_custom_call.1} parent=47 // pred_fallthru
          _
      $region48: #{tpu_custom_call.1} parent=5 // pred_fallthru
        _
      %p357 = scmp.le.s32.totalorder 1, %s21
      %p358 = scmp.lt.s32.totalorder %s21, 3
      %p359 = pnand %p357, %p358
      %p360 = pneg %p359
      // Predicated region
      $region53: #{tpu_custom_call.1} parent=5 // pred_check
        _
      $region54: #{tpu_custom_call.1} parent=5 // pred_check_branch
        %362 = sbr.rel (%p359) target = $region56
      $region55: #{tpu_custom_call.1} parent=5 // pred_region
        %s363 = ssub.s32 %s21, 1
        %p364 = scmp.lt.s32.totalorder %s30, 1
        %s365 = scalar_select %p364, %s30, 1
        %s366 = smul.addr %s365, 8
        %s367 = scalar_lea.vmem %s0, %s366
        %p368 = pneg %p59
        %p369 = pneg %p56
        %p370 = scmp.lt.s32.totalorder %s31, 0
        %s371 = scalar_select %p370, %s31, 0
        %s372 = smul.addr %s371, 8
        %s373 = scalar_lea.vmem %s1, %s372
        %p374 = pneg %p85
        %p375 = pneg %p82
        %p376 = scmp.lt.s32.totalorder %s31, 0
        %s377 = scalar_select %p376, %s31, 0
        %s378 = scalar_lea.vmem %s2, %s377
        %p379 = pneg %p111
        %p380 = pneg %p108
        %s381 = smul.u32 8, %s31
        %p382 = scmp.lt.s32.totalorder %s381, 7
        %s383 = scalar_select %p382, %s381, 7
        %s384 = smul.addr %s383, 8
        %s385 = scalar_lea.vmem %s3, %s384
        %p386 = pneg %p137
        %p387 = pneg %p134
        %p388 = pneg %p158
        %p389 = pneg %p155
        %p390 = pneg %p179
        %p391 = pneg %p176
        %p392 = pneg %p200
        %p393 = pneg %p197
        %p394 = pneg %p221
        %p395 = pneg %p218
        %p396 = pneg %p242
        %p397 = pneg %p239
        %p398 = pneg %p268
        %p399 = pneg %p265
        %s400 = sand.u32 %s255, 1
        %s401 = scalar_lea.sflag [#allocation5], %s400
        %s402 = sand.u32 %s255, 1
        %s403 = smul.addr %s402, 8
        %s404 = scalar_lea.vmem [#allocation4], %s403
        %p405 = pneg %p294
        %p406 = pneg %p291
        %p407 = scmp.lt.s32.totalorder %s30, 1
        %s408 = scalar_select %p407, %s30, 1
        %s409 = smul.addr %s408, 8
        %s410 = scalar_lea.vmem %s10, %s409
        %p411 = scmp.lt.s32.totalorder %s30, 1
        %s412 = scalar_select %p411, %s30, 1
        %s413 = smul.addr %s412, 8
        %s414 = scalar_lea.vmem %s0, %s413
        %p415 = scmp.lt.s32.totalorder %s31, 0
        %s416 = scalar_select %p415, %s31, 0
        %s417 = smul.addr %s416, 8
        %s418 = scalar_lea.vmem %s1, %s417
        %p419 = scmp.lt.s32.totalorder %s31, 0
        %s420 = scalar_select %p419, %s31, 0
        %s421 = scalar_lea.vmem %s2, %s420
        %s422 = smul.u32 8, %s31
        %p423 = scmp.lt.s32.totalorder %s422, 7
        %s424 = scalar_select %p423, %s422, 7
        %s425 = smul.addr %s424, 8
        %s426 = scalar_lea.vmem %s3, %s425
        %s427 = smul.u32 8, %s31
        %p428 = scmp.lt.s32.totalorder %s30, 1
        %s429 = scalar_select %p428, %s30, 1
        %s430 = smul.addr %s429, 8
        %s431 = scalar_lea.vmem %s10, %s430
        %p432 = scmp.eq.s32.totalorder %s31, 0
        // Predicated region
        $region57: #{tpu_custom_call.1} parent=55 // pred_check
          %p433 = pneg %p432
        $region58: #{tpu_custom_call.1} parent=55 // pred_check_branch
          %435 = sbr.rel (%p433) target = $region60
        $region59: #{tpu_custom_call.1} parent=55 // pred_region
          %vm436 = vcmask 261120
          %437 = vst.msk [vmem:[#allocation2] sm:$0xff] %vm436, 0.0
        $region60: #{tpu_custom_call.1} parent=55 // pred_fallthru
          _
        %v438 = vld [vmem:[%s414] sm:$0xff]
        %v439 = vld [vmem:[%s418] sm:$0xff]
        %v440 = vld [vmem:[%s418 + $0x8] sm:$0xff]
        %v441 = vld [vmem:[%s418 + $0x10] sm:$0xff]
        %v442 = vld [vmem:[%s418 + $0x18] sm:$0xff]
        %v443 = vld [vmem:[%s421] sm:$0x1]
        %v445 = vperm.slane %v443, 0
        %vm447 = vcmask 261120
        %v449 = vsel %vm447, %v438, 0
        %451 = vmatpush.msra.mxu0 0.0
        %452 = vmatpush.msra.mxu0 0.0
        %453 = vmatpush.msra.mxu0 0.0
        %454 = vmatpush.msra.mxu0 0.0
        %455 = vmatpush.msra.mxu0 0.0
        %456 = vmatpush.msra.mxu0 0.0
        %457 = vmatpush.msra.mxu0 0.0
        %458 = vmatpush.msra.mxu0 0.0
        %459 = vmatpush.msra.mxu0 0.0
        %460 = vmatpush.msra.mxu0 0.0
        %461 = vmatpush.msra.mxu0 0.0
        %462 = vmatpush.msra.mxu0 0.0
        %463 = vmatpush.msra.mxu0 %v442
        %464 = vmatpush.msra.mxu0 %v441
        %465 = vmatpush.msra.mxu0 %v440
        %466 = vmatpush.msra.mxu0 %v439
        %467 = vmatmul.f32.gmra.mxu0 %v449
        %v468 = vpop.f32.mrf.mxu0
        %v469 = vadd.f32 %v445, %v468
        %470 = vdwg.mxu0
        %v471 = vmax.f32 %v469, 0.0
        %v472 = vld [vmem:[#allocation2] sm:$0xff]
        %v473 = vld [vmem:[%s426] sm:$0xff]
        %v474 = vld [vmem:[%s426 + $0x8] sm:$0xff]
        %v475 = vld [vmem:[%s426 + $0x10] sm:$0xff]
        %v476 = vld [vmem:[%s426 + $0x18] sm:$0xff]
        %v477 = vld [vmem:[%s426 + $0x20] sm:$0xff]
        %v478 = vld [vmem:[%s426 + $0x28] sm:$0xff]
        %v479 = vld [vmem:[%s426 + $0x30] sm:$0xff]
        %v480 = vld [vmem:[%s426 + $0x38] sm:$0xff]
        %vm481 = vcmask 523264
        %v483 = vsel %vm481, %v471, 0
        %485 = vmatpush.msra.mxu0 0.0
        %486 = vmatpush.msra.mxu0 0.0
        %487 = vmatpush.msra.mxu0 0.0
        %488 = vmatpush.msra.mxu0 0.0
        %489 = vmatpush.msra.mxu0 0.0
        %490 = vmatpush.msra.mxu0 0.0
        %491 = vmatpush.msra.mxu0 0.0
        %492 = vmatpush.msra.mxu0 0.0
        %493 = vmatpush.msra.mxu0 %v480
        %494 = vmatpush.msra.mxu0 %v479
        %495 = vmatpush.msra.mxu0 %v478
        %496 = vmatpush.msra.mxu0 %v477
        %497 = vmatpush.msra.mxu0 %v476
        %498 = vmatpush.msra.mxu0 %v475
        %499 = vmatpush.msra.mxu0 %v474
        %500 = vmatpush.msra.mxu0 %v473
        %501 = vmatmul.f32.gmra.mxu0 %v483
        %v502 = vpop.f32.mrf.mxu0
        %v503 = vadd.f32 0.0, %v502
        %504 = vdwg.mxu0
        %v505 = vadd.f32 %v472, %v503
        %506 = vst.msk [vmem:[#allocation2] sm:$0xff] %vm447, %v505
        // Predicated region
        $region61: #{tpu_custom_call.1} parent=55 // pred_check
          %p507 = pneg %p432
        $region62: #{tpu_custom_call.1} parent=55 // pred_check_branch
          %509 = sbr.rel (%p507) target = $region64
        $region63: #{tpu_custom_call.1} parent=55 // pred_region
          %v510 = vld [vmem:[#allocation2] sm:$0xff]
          %v511 = vld [vmem:[%s4] sm:$0x1]
          %v513 = vperm.slane %v511, 0
          %v515 = vadd.f32 %v510, %v513
          %v516 = vadd.f32 %v515, %v438
          %v517 = vsel %vm447, %v516, 0.0
          %518 = vadd.xlane.f32.xlu0 %v517
          %v519 = vpop.xlane.xlu0 %518
          %v520 = vrcp.pop 32.0
          %v521 = vmul.f32 32.0, %v520
          %v522 = vsub.f32 1.0, %v521
          %v523 = vmul.f32 %v520, %v522
          %v524 = vadd.f32 %v520, %v523
          %vm525 = vweird.f32 %v520
          %v526 = vsel %vm525, %v520, %v524
          %v527 = vmul.f32 %v519, %v526
          %v528 = vsub.f32 %v516, %v527
          %v529 = vmul.f32 %v528, %v528
          %v530 = vsel %vm447, %v529, 0.0
          %531 = vadd.xlane.f32.xlu0 %v530
          %v532 = vpop.xlane.xlu0 %531
          %v533 = vmul.f32 %v532, %v526
          %v534 = vadd.f32 %v533, 1e-05
          %v535 = vrsqrt.pop %v534
          %v536 = vmul.f32 %v535, %v534
          %v537 = vmul.f32 %v536, %v535
          %v538 = vmul.f32 0.5, %v537
          %v539 = vsub.f32 1.5, %v538
          %v540 = vmul.f32 %v535, %v539
          %vm541 = vweird.f32 %v534
          %vm542 = vweird.f32 %v535
          %vm543 = vmor %vm541, %vm542
          %v544 = vsel %vm543, %v535, %v540
          %v545 = vmul.f32 %v528, %v544
          %v546 = vld [vmem:[%s5] sm:$0x1]
          %v548 = vperm.slane %v546, 0
          %v550 = vmul.f32 %v545, %v548
          %v551 = vld [vmem:[%s6] sm:$0x1]
          %v553 = vperm.slane %v551, 0
          %v555 = vadd.f32 %v550, %v553
          %v556 = vld [vmem:[%s7] sm:$0x1]
          %v558 = vperm.slane %v556, 0
          %v560 = vmul.f32 %v438, %v558
          %v561 = vsel %vm447, %v560, 0.0
          %562 = vadd.xlane.f32.xlu0 %v561
          %v563 = vpop.xlane.xlu0 %562
          %s564 = sld [smem:[#allocation3]]
          %v565 = vstv %s564
          %v566 = vadd.f32 %v563, %v565
          %v567 = vsub.f32 0.0, %v566
          %v568 = vmul.f32 %v567, 1.442695
          %v569 = vpow.pop %v568
          %v570 = vadd.f32 %v569, 1.0
          %v571 = vrcp.pop %v570
          %v572 = vmul.f32 %v570, %v571
          %v573 = vsub.f32 1.0, %v572
          %v574 = vmul.f32 %v571, %v573
          %v575 = vadd.f32 %v571, %v574
          %vm576 = vweird.f32 %v570
          %vm577 = vweird.f32 %v571
          %vm578 = vmor %vm576, %vm577
          %v579 = vsel %vm578, %v571, %v575
          %v580 = vand.u32 2147483647, %v570
          %vm581 = vcmp.eq.f32.partialorder %v580, 8.507059e+37
          %v582 = vand.u32 %v570, 2147483648
          %v583 = vor.u32 1.1754944e-38, %v582
          %v584 = vsel %vm581, %v583, %v579
          %v585 = vmul.f32 1.0, %v584
          %vm586 = vcmp.gt.f32.partialorder %v585, 0.9
          %v587 = vsel %vm586, 1, 0
          %vm588 = vcmp.eq.s32.totalorder %v587, 1
          %v589 = vsel %vm588, %v438, %v555
          %590 = vst.msk [vmem:[%s404] sm:$0xff] %vm447, %v589
          %vm591 = vcmask 7168
          %592 = vst.msk [vmem:[%s431] sm:$0xff] %vm591, %v585
        $region64: #{tpu_custom_call.1} parent=55 // pred_fallthru
          _
        %s593 = sand.u32 %s255, 1
        %s594 = scalar_lea.sflag [#allocation5], %s593
        %s595 = sand.u32 %s255, 1
        %s596 = smul.addr %s595, 8
        %s597 = scalar_lea.vmem [#allocation4], %s596
        %p598 = scmp.lt.s32.totalorder %s30, 1
        %s599 = scalar_select %p598, %s30, 1
        %s600 = smul.addr %s599, 8
        %s601 = scalar_lea.vmem %s10, %s600
        // Predicated region
        $region65: #{tpu_custom_call.1} parent=55 // pred_check
          %p602 = pneg %p265
        $region66: #{tpu_custom_call.1} parent=55 // pred_check_branch
          %604 = sbr.rel (%p602) target = $region68
        $region67: #{tpu_custom_call.1} parent=55 // pred_region
          %606 = vsyncadd %s594, 0
          %s607 = smul.addr %s30, 8
          %s608 = scalar_lea.hbm %s9, %s607
          %s610 = sshll.u32 %s597, 4
          %s611 = int_to_ptr.vmem [resolvable:$true] %s610
          %s612 = sshll.u32 %s608, 4
          %s613 = int_to_ptr.hbm [resolvable:$true] %s612
          %615 = dma.vmem_to_hbm [thread:$0]  %s611, 128, %s613, %s594
        $region68: #{tpu_custom_call.1} parent=55 // pred_fallthru
          _
        // Predicated region
        $region69: #{tpu_custom_call.1} parent=55 // pred_check
          %p616 = pneg %p291
        $region70: #{tpu_custom_call.1} parent=55 // pred_check_branch
          %618 = sbr.rel (%p616) target = $region72
        $region71: #{tpu_custom_call.1} parent=55 // pred_region
          _
        $region72: #{tpu_custom_call.1} parent=55 // pred_fallthru
          _
      $region56: #{tpu_custom_call.1} parent=5 // pred_fallthru
        _
      %p619 = scmp.le.s32.totalorder 2, %s21
      // Predicated region
      $region73: #{tpu_custom_call.1} parent=5 // pred_check
        %p620 = pneg %p619
      $region74: #{tpu_custom_call.1} parent=5 // pred_check_branch
        %622 = sbr.rel (%p620) target = $region76
      $region75: #{tpu_custom_call.1} parent=5 // pred_region
        %s623 = ssub.s32 %s21, 2
        // Predicated region
        $region77: #{tpu_custom_call.1} parent=75 // pred_check
          %p624 = pneg %p271
        $region78: #{tpu_custom_call.1} parent=75 // pred_check_branch
          %626 = sbr.rel (%p624) target = $region80
        $region79: #{tpu_custom_call.1} parent=75 // pred_region
          %s627 = sand.u32 %s256, 1
          %s628 = scalar_lea.sflag [#allocation5], %s627
          %s629 = sand.u32 %s256, 1
          %s630 = smul.addr %s629, 8
          %s631 = scalar_lea.vmem [#allocation4], %s630
          %633 = dma.done %s628, 128
        $region80: #{tpu_custom_call.1} parent=75 // pred_fallthru
          _
        // Predicated region
        $region81: #{tpu_custom_call.1} parent=75 // pred_check
          %p634 = pneg %p297
        $region82: #{tpu_custom_call.1} parent=75 // pred_check_branch
          %636 = sbr.rel (%p634) target = $region84
        $region83: #{tpu_custom_call.1} parent=75 // pred_region
          %p637 = scmp.lt.s32.totalorder %s32, 1
          %s638 = scalar_select %p637, %s32, 1
          %s639 = smul.addr %s638, 8
          %s640 = scalar_lea.vmem %s10, %s639
        $region84: #{tpu_custom_call.1} parent=75 // pred_fallthru
          _
      $region76: #{tpu_custom_call.1} parent=5 // pred_fallthru
        _
    $region6: #{tpu_custom_call.1} parent=1 // loop_footer
      %s25 = sadd.s32 1, %s21
    $region7: #{tpu_custom_call.1} parent=1 // loop_footer_branch
      %20 = sbr.rel target = $region3
    $region8: #{tpu_custom_call.1} parent=1 // loop_exit
      _
    %641 = vsyncpa [#allocation5], 1
    %s642 = scalar_lea.sflag [#allocation5], 1
    %643 = vsyncpa %s642, 1

</llo_original>
